<compile_context>
chip_gen: v5e
topology: v5e:2x2
jax: 0.10.0
libtpu: 0.0.40
codegen_flags: <defaults>
</compile_context>

<pallas_src>
import math

import jax
import jax.numpy as jnp
from jax.experimental import pallas as pl
from jax.experimental.pallas import tpu as pltpu


def _round_up(a, b):
    return (a + b - 1) // b * b


def _cdiv(a, b):
    return (a + b - 1) // b


def _vmem_capacity_bytes():
    try:
        info = pltpu.get_tpu_info()
        cap = int(getattr(info, "vmem_capacity_bytes", 0) or 0)
        if cap > 0:
            return cap
    except Exception:
        pass
    return 64 * 1024 * 1024  # conservative fallback = v7x per-TensorCore VMEM


def _dot(a, b):
    # Full f32 accuracy when both operands are f32 (matches an f32 torch reference);
    # bf16 / int8 operands are fed to the MXU natively with f32 accumulation.
    prec = (jax.lax.Precision.HIGHEST
            if a.dtype == jnp.float32 and b.dtype == jnp.float32 else None)
    return jnp.dot(a, b, preferred_element_type=jnp.float32, precision=prec)


def _gelu_exact(h):
    # Exact (erf) GELU in f32 — matches torch.nn.GELU() default (approximate='none').
    return 0.5 * h * (1.0 + jax.lax.erf(h * (1.0 / math.sqrt(2.0))))


# ------------------------------- kernels -------------------------------

def _ffn_kernel_single(x_ref, w1_ref, b1_ref, w2_ref, b2_ref, o_ref):
    # Whole hidden dim resident: no k axis, no accumulator, write the output directly.
    h = _dot(x_ref[...], w1_ref[...]) + b1_ref[...].astype(jnp.float32)
    g = _gelu_exact(h)
    # Dropout(p=0.0) is an identity — elided.
    out = _dot(g.astype(w2_ref.dtype), w2_ref[...])
    o_ref[...] = (out + b2_ref[...].astype(jnp.float32)).astype(o_ref.dtype)


def _ffn_kernel_chunked(x_ref, w1_ref, b1_ref, w2_ref, b2_ref, o_ref, acc_ref):
    # Hidden dim tiled along grid axis 1; partial sums accumulate in the f32 VMEM scratch.
    k = pl.program_id(1)

    @pl.when(k == 0)
    def _init():
        acc_ref[...] = jnp.zeros_like(acc_ref)

    h = _dot(x_ref[...], w1_ref[...]) + b1_ref[...].astype(jnp.float32)
    g = _gelu_exact(h)
    acc_ref[...] += _dot(g.astype(w2_ref.dtype), w2_ref[...])

    @pl.when(k == pl.num_programs(1) - 1)
    def _finalize():
        o_ref[...] = (acc_ref[...] + b2_ref[...].astype(jnp.float32)).astype(o_ref.dtype)


# --------------------------- tile selection -----------------------------

def _tm_cap(M, sublane):
    cap = min(1024, _round_up(max(M, 1), sublane))
    if M >= 2 * sublane:  # keep >= 2 row tiles so v7x's two TensorCores both get work
        cap = min(cap, _round_up(_cdiv(M, 2), sublane))
    return max(cap, sublane)


def _vmem_max_tm(th, chunked, dim_p, bytes_x, bytes_w, budget, sublane, tm_cap):
    # Per-step VMEM: double-buffered x/out/W1/W2/bias blocks, the (tm, th) f32 GELU
    # intermediate, and (chunked only) the (tm, dim) f32 accumulator scratch.
    const = 4 * dim_p * th * bytes_w + 2 * th * bytes_w + 2 * dim_p * bytes_w
    per_tm = 4 * dim_p * bytes_x + 4 * th + (4 * dim_p if chunked else 0)
    tm = (budget - const) // per_tm
    if tm < sublane:
        return None
    return int(min(tm_cap, (tm // sublane) * sublane))


def _select_tiles(M, dim_p, hidden, bytes_x, bytes_w, budget, sublane):
    """Return (tm, th, hidden_pad, chunked)."""
    tm_cap = _tm_cap(M, sublane)
    candidates = []

    # Single-chunk option: whole hidden resident -> weights DMA'd from HBM exactly once.
    tm = _vmem_max_tm(hidden, False, dim_p, bytes_x, bytes_w, budget, sublane, tm_cap)
    if tm is not None:
        candidates.append((tm, hidden, hidden, False))

    # Chunked options: lane-aligned hidden chunks (powers of two * 128).
    th = 128
    while th < hidden:
        tm = _vmem_max_tm(th, True, dim_p, bytes_x, bytes_w, budget, sublane, tm_cap)
        if tm is not None:
            candidates.append((tm, th, _round_up(hidden, th), True))
        th *= 2

    if not candidates:  # minimal legal tiles; the budget<->vmem_limit gap absorbs the overshoot
        return sublane, 128, _round_up(hidden, 128), True

    hbm_bw = 1.0e12          # rough B/s — relative scoring only
    step_overhead = 0.35e-6  # per-grid-step overhead (s)

    def score(c):
        tm, th, hid_p, chunked = c
        n_rows = _cdiv(M, tm)
        nk = hid_p // th
        weight_bytes = 2 * dim_p * hid_p * bytes_w
        weight_passes = n_rows if chunked else 1   # constant block index => DMA'd once
        io_bytes = 2 * n_rows * tm * dim_p * bytes_x
        return (weight_passes * weight_bytes + io_bytes) / hbm_bw + n_rows * nk * step_overhead

    return min(candidates, key=score)


# ------------------------------- wrapper --------------------------------

def feed_forward(x, w1, b1, w2, b2, *, force_hidden_chunk=None):
    """x: (..., dim). w1: (dim, hidden), b1: (hidden,), w2: (hidden, dim), b2: (dim,).
    force_hidden_chunk (test hook): force the chunked path with that hidden chunk (mult of 128)."""
    orig_shape = x.shape
    dim = orig_shape[-1]
    hidden = w1.shape[1]

    x2 = x.reshape(-1, dim)
    M = x2.shape[0]

    bytes_x = jnp.dtype(x.dtype).itemsize
    bytes_w = jnp.dtype(w1.dtype).itemsize
    sublane = {4: 8, 2: 16, 1: 32}.get(bytes_x, 8)

    dim_p = _round_up(dim, 128)  # lane-dense output stores + full MXU lanes

    cap = _vmem_capacity_bytes()
    budget = int(cap * 0.65)     # tile-selection budget
    vmem_limit = int(cap * 0.75)  # ~48 MiB on v7x, ~96 MiB on v5e/v6e

    if force_hidden_chunk is not None:
        th = int(force_hidden_chunk)
        tm = _vmem_max_tm(th, True, dim_p, bytes_x, bytes_w, budget, sublane,
                          _tm_cap(M, sublane)) or sublane
        hidden_p, chunked = _round_up(hidden, th), True
    else:
        tm, th, hidden_p, chunked = _select_tiles(M, dim_p, hidden, bytes_x, bytes_w,
                                                  budget, sublane)

    m_pad = _round_up(max(M, 1), tm)

    # --- zero padding (padded rows/cols contribute nothing and are sliced off) ---
    if m_pad != M:
        x2 = jnp.pad(x2, ((0, m_pad - M), (0, 0)))
    if dim_p != dim:
        x2 = jnp.pad(x2, ((0, 0), (0, dim_p - dim)))
        w1 = jnp.pad(w1, ((0, dim_p - dim), (0, 0)))
        w2 = jnp.pad(w2, ((0, 0), (0, dim_p - dim)))
        b2 = jnp.pad(b2, ((0, dim_p - dim),))
    if hidden_p != hidden:
        w1 = jnp.pad(w1, ((0, 0), (0, hidden_p - hidden)))
        b1 = jnp.pad(b1, ((0, hidden_p - hidden),))
        w2 = jnp.pad(w2, ((0, hidden_p - hidden), (0, 0)))
    b1_2d = b1.reshape(1, hidden_p)
    b2_2d = b2.reshape(1, dim_p)

    n_rows = m_pad // tm

    if chunked:
        nk = hidden_p // th

        def w_k(i, k):
            # Serpentine hidden order: odd row tiles walk the chunks backwards, so the last
            # chunk of row tile i is reused (no re-DMA) as the first chunk of row tile i+1.
            return (i % 2) * (nk - 1 - 2 * k) + k

        grid = (n_rows, nk)
        in_specs = [
            pl.BlockSpec((tm, dim_p), lambda i, k: (i, 0)),           # x row tile
            pl.BlockSpec((dim_p, th), lambda i, k: (0, w_k(i, k))),   # W1 hidden chunk
            pl.BlockSpec((1, th), lambda i, k: (0, w_k(i, k))),       # b1 hidden chunk
            pl.BlockSpec((th, dim_p), lambda i, k: (w_k(i, k), 0)),   # W2 hidden chunk
            pl.BlockSpec((1, dim_p), lambda i, k: (0, 0)),            # b2
        ]
        out_spec = pl.BlockSpec((tm, dim_p), lambda i, k: (i, 0))
        scratch = [pltpu.VMEM((tm, dim_p), jnp.float32)]
        kernel = _ffn_kernel_chunked
        dim_sems = ("parallel", "arbitrary")
    else:
        grid = (n_rows,)
        in_specs = [
            pl.BlockSpec((tm, dim_p), lambda i: (i, 0)),              # x row tile
            pl.BlockSpec((dim_p, hidden_p), lambda i: (0, 0)),        # W1 (resident)
            pl.BlockSpec((1, hidden_p), lambda i: (0, 0)),            # b1
            pl.BlockSpec((hidden_p, dim_p), lambda i: (0, 0)),        # W2 (resident)
            pl.BlockSpec((1, dim_p), lambda i: (0, 0)),               # b2
        ]
        out_spec = pl.BlockSpec((tm, dim_p), lambda i: (i, 0))
        scratch = []
        kernel = _ffn_kernel_single
        dim_sems = ("parallel",)

    weight_bytes = 2 * dim_p * hidden_p * bytes_w
    weight_passes = n_rows if chunked else 1  # constant block index => weights DMA'd once
    bytes_accessed = int(2 * m_pad * dim_p * bytes_x          # x in + out
                         + weight_passes * weight_bytes
                         + (hidden_p + dim_p) * jnp.dtype(b1.dtype).itemsize)
    cost = pl.CostEstimate(flops=4 * m_pad * hidden_p * dim_p,
                           transcendentals=m_pad * hidden_p,
                           bytes_accessed=bytes_accessed)

    out = pl.pallas_call(
        kernel,
        out_shape=jax.ShapeDtypeStruct((m_pad, dim_p), x.dtype),
        grid_spec=pltpu.PrefetchScalarGridSpec(
            num_scalar_prefetch=0,
            grid=grid,
            in_specs=in_specs,
            out_specs=out_spec,
            scratch_shapes=scratch,
        ),
        compiler_params=pltpu.CompilerParams(
            dimension_semantics=dim_sems,
            vmem_limit_bytes=vmem_limit,
        ),
        cost_estimate=cost,
    )(x2, w1, b1_2d, w2, b2_2d)

    out = out[:M, :dim]
    return out.reshape(orig_shape)


def _reference(x, w1, b1, w2, b2):
    h = jnp.dot(x, w1, precision=jax.lax.Precision.HIGHEST) + b1
    g = _gelu_exact(h)
    return jnp.dot(g, w2, precision=jax.lax.Precision.HIGHEST) + b2


if __name__ == "__main__":
    # Module config: dim=32, hidden_dim=64, dropout=0.0 (small test shapes: batch=2, seq=8).
    B, S, dim, hidden = 2, 8, 32, 64

    key = jax.random.PRNGKey(0)
    kx, kw1, kb1, kw2, kb2 = jax.random.split(key, 5)

    x = jax.random.normal(kx, (B, S, dim), dtype=jnp.float32)

    # nn.Linear(dim, hidden): PyTorch stores weight as (hidden, dim); the kernel takes the
    # transpose (dim, hidden). Init mimics PyTorch's uniform(-1/sqrt(fan_in), 1/sqrt(fan_in)).
    bound1 = 1.0 / math.sqrt(dim)
    w1 = jax.random.uniform(kw1, (dim, hidden), minval=-bound1, maxval=bound1, dtype=jnp.float32)
    b1 = jax.random.uniform(kb1, (hidden,), minval=-bound1, maxval=bound1, dtype=jnp.float32)
    bound2 = 1.0 / math.sqrt(hidden)
    w2 = jax.random.uniform(kw2, (hidden, dim), minval=-bound2, maxval=bound2, dtype=jnp.float32)
    b2 = jax.random.uniform(kb2, (dim,), minval=-bound2, maxval=bound2, dtype=jnp.float32)

    out = jax.block_until_ready(feed_forward(x, w1, b1, w2, b2))
    ref = _reference(x, w1, b1, w2, b2)
    assert out.shape == x.shape
    assert jnp.allclose(out, ref, atol=1e-4, rtol=1e-4), "single-chunk path mismatch vs. reference"

    # Also exercise the chunked (hidden-tiled) path, serpentine k order, and hidden padding.
    hidden2 = 192
    kw1b, kb1b, kw2b, kb2b = jax.random.split(kw2, 4)
    bound1b = 1.0 / math.sqrt(dim)
    w1b = jax.random.uniform(kw1b, (dim, hidden2), minval=-bound1b, maxval=bound1b,
                             dtype=jnp.float32)
    b1b = jax.random.uniform(kb1b, (hidden2,), minval=-bound1b, maxval=bound1b, dtype=jnp.float32)
    bound2b = 1.0 / math.sqrt(hidden2)
    w2b = jax.random.uniform(kw2b, (hidden2, dim), minval=-bound2b, maxval=bound2b,
                             dtype=jnp.float32)
    b2b = jax.random.uniform(kb2b, (dim,), minval=-bound2b, maxval=bound2b, dtype=jnp.float32)

    out2 = jax.block_until_ready(feed_forward(x, w1b, b1b, w2b, b2b, force_hidden_chunk=128))
    ref2 = _reference(x, w1b, b1b, w2b, b2b)
    assert out2.shape == x.shape
    assert jnp.allclose(out2, ref2, atol=1e-4, rtol=1e-4), "chunked path mismatch vs. reference"

    print("KERNEL_OK")
</pallas_src>

<mosaic_0001>
module attributes {stable_mosaic.version = 11 : i64} {
  func.func @_ffn_kernel_single(%arg0: i32, %arg1: memref<8x128xf32, #tpu.memory_space<vmem>>, %arg2: memref<128x64xf32, #tpu.memory_space<vmem>>, %arg3: memref<1x64xf32, #tpu.memory_space<vmem>>, %arg4: memref<64x128xf32, #tpu.memory_space<vmem>>, %arg5: memref<1x128xf32, #tpu.memory_space<vmem>>, %arg6: memref<8x128xf32, #tpu.memory_space<vmem>>) attributes {dimension_semantics = [#tpu.dimension_semantics<parallel>], iteration_bounds = array<i64: 2>, scalar_prefetch = 0 : i64, scratch_operands = 0 : i64, tpu.core_type = #tpu.core_type<tc>, window_params = [{transform_indices = @transform_0, window_bounds = array<i64: 8, 128>}, {pipeline_mode = #tpu.pipeline_mode<synchronous>, transform_indices = @transform_1, window_bounds = array<i64: 128, 64>}, {pipeline_mode = #tpu.pipeline_mode<synchronous>, transform_indices = @transform_2, window_bounds = array<i64: 1, 64>}, {pipeline_mode = #tpu.pipeline_mode<synchronous>, transform_indices = @transform_3, window_bounds = array<i64: 64, 128>}, {pipeline_mode = #tpu.pipeline_mode<synchronous>, transform_indices = @transform_4, window_bounds = array<i64: 1, 128>}, {transform_indices = @transform_5, window_bounds = array<i64: 8, 128>}]} {
    %c0 = arith.constant 0 : index
    %c0_0 = arith.constant 0 : index
    %0 = vector.load %arg1[%c0, %c0_0] : memref<8x128xf32, #tpu.memory_space<vmem>>, vector<8x128xf32>
    %c0_1 = arith.constant 0 : index
    %c0_2 = arith.constant 0 : index
    %1 = vector.load %arg2[%c0_1, %c0_2] : memref<128x64xf32, #tpu.memory_space<vmem>>, vector<128x64xf32>
    %cst = arith.constant dense<0.000000e+00> : vector<8x64xf32>
    %2 = tpu.matmul %0, %1, %cst {dimension_numbers = #tpu.dot_dimension_numbers<[1], [0], [0], [1], [0, 0, 1, 1], [], []>, precision = #tpu.contract_precision<fp32>} : vector<8x128xf32>, vector<128x64xf32>, vector<8x64xf32> -> vector<8x64xf32>
    %c0_3 = arith.constant 0 : index
    %c0_4 = arith.constant 0 : index
    %3 = vector.load %arg3[%c0_3, %c0_4] : memref<1x64xf32, #tpu.memory_space<vmem>>, vector<1x64xf32>
    %4 = vector.broadcast %3 : vector<1x64xf32> to vector<8x64xf32>
    %5 = arith.addf %2, %4 : vector<8x64xf32>
    %cst_5 = arith.constant 5.000000e-01 : f32
    %6 = vector.broadcast %cst_5 : f32 to vector<8x64xf32>
    %7 = arith.mulf %6, %5 : vector<8x64xf32>
    %cst_6 = arith.constant 0.707106769 : f32
    %8 = vector.broadcast %cst_6 : f32 to vector<8x64xf32>
    %9 = arith.mulf %5, %8 : vector<8x64xf32>
    %10 = math.erf %9 : vector<8x64xf32>
    %cst_7 = arith.constant 1.000000e+00 : f32
    %11 = vector.broadcast %cst_7 : f32 to vector<8x64xf32>
    %12 = arith.addf %11, %10 : vector<8x64xf32>
    %13 = arith.mulf %7, %12 : vector<8x64xf32>
    %c0_8 = arith.constant 0 : index
    %c0_9 = arith.constant 0 : index
    %14 = vector.load %arg4[%c0_8, %c0_9] : memref<64x128xf32, #tpu.memory_space<vmem>>, vector<64x128xf32>
    %cst_10 = arith.constant dense<0.000000e+00> : vector<8x128xf32>
    %15 = tpu.matmul %13, %14, %cst_10 {dimension_numbers = #tpu.dot_dimension_numbers<[1], [0], [0], [1], [0, 0, 1, 1], [], []>, precision = #tpu.contract_precision<fp32>} : vector<8x64xf32>, vector<64x128xf32>, vector<8x128xf32> -> vector<8x128xf32>
    %c0_11 = arith.constant 0 : index
    %c0_12 = arith.constant 0 : index
    %16 = vector.load %arg5[%c0_11, %c0_12] : memref<1x128xf32, #tpu.memory_space<vmem>>, vector<1x128xf32>
    %17 = vector.broadcast %16 : vector<1x128xf32> to vector<8x128xf32>
    %18 = arith.addf %15, %17 : vector<8x128xf32>
    %c0_13 = arith.constant 0 : index
    %c0_14 = arith.constant 0 : index
    %19 = vector.load %arg6[%c0_13, %c0_14] : memref<8x128xf32, #tpu.memory_space<vmem>>, vector<8x128xf32>
    tpu.vector_store %arg6[%c0_13, %c0_14], %18 {strides = array<i32>} : memref<8x128xf32, #tpu.memory_space<vmem>>, vector<8x128xf32>,
    return
  }
  func.func @transform_0(%arg0: i32) -> (i32, i32) {
    %c0_i32 = arith.constant 0 : i32
    %c0_i32_0 = arith.constant 0 : i32
    return %arg0, %c0_i32 : i32, i32
  }
  func.func @transform_1(%arg0: i32) -> (i32, i32) {
    %c0_i32 = arith.constant 0 : i32
    %c0_i32_0 = arith.constant 0 : i32
    %c0_i32_1 = arith.constant 0 : i32
    return %c0_i32, %c0_i32_0 : i32, i32
  }
  func.func @transform_2(%arg0: i32) -> (i32, i32) {
    %c0_i32 = arith.constant 0 : i32
    %c0_i32_0 = arith.constant 0 : i32
    %c0_i32_1 = arith.constant 0 : i32
    return %c0_i32, %c0_i32_0 : i32, i32
  }
  func.func @transform_3(%arg0: i32) -> (i32, i32) {
    %c0_i32 = arith.constant 0 : i32
    %c0_i32_0 = arith.constant 0 : i32
    %c0_i32_1 = arith.constant 0 : i32
    return %c0_i32, %c0_i32_0 : i32, i32
  }
  func.func @transform_4(%arg0: i32) -> (i32, i32) {
    %c0_i32 = arith.constant 0 : i32
    %c0_i32_0 = arith.constant 0 : i32
    %c0_i32_1 = arith.constant 0 : i32
    return %c0_i32, %c0_i32_0 : i32, i32
  }
  func.func @transform_5(%arg0: i32) -> (i32, i32) {
    %c0_i32 = arith.constant 0 : i32
    %c0_i32_0 = arith.constant 0 : i32
    return %arg0, %c0_i32 : i32, i32
  }
}

</mosaic_0001>

<llo_original>
// kernel: tpu_custom_call.1
$region0: #{tpu_custom_call.1}
  #allocation0 [shape = 'u32[]', space=smem, size = 0x4, offset = 0x4, fixed_abs, tag = 'smem constant byte address 0x4 - core index']
  #allocation1 [shape = 'u32[72,128]{1,0:T(1,128)}', space=vmem, size = 0x9000, scoped, tag = 'internal scratch']
  %s0 = inlined_call_operand.vmem [shape: f32[16,128], index: 0, kind: input, shape index: {}]
  %s1 = inlined_call_operand.vmem [shape: f32[128,64], index: 1, kind: input, shape index: {}]
  %s2 = inlined_call_operand.vmem [shape: f32[1,64], index: 2, kind: input, shape index: {}]
  %s3 = inlined_call_operand.vmem [shape: f32[64,128], index: 3, kind: input, shape index: {}]
  %s4 = inlined_call_operand.vmem [shape: f32[1,128], index: 4, kind: input, shape index: {}]
  %s5 = inlined_call_operand.hbm [shape: f32[16,128], index: 5, kind: output, shape index: {}]
  %s6 = sld [smem:[#allocation0]]
  $region53: #{tpu_custom_call.1} parent=0
    _
  %s8 = ssub.s32 1, %s6
  %s9 = scalar_select 0, %s8, %s6
  $region1: #{tpu_custom_call.1} parent=0
    #allocation2 [shape = 'u8[8192]{0}', space=vmem, size = 0x2000, scoped, tag = 'output window, operand 0']
    #allocation3 [shape = 's32[2]{0}', space=sflag, size = 0x8, scoped, tag = 'scoped memory for tpu_custom_call.1']
    %10 = vsyncpa [#allocation3], 0
    %s11 = scalar_lea.sflag [#allocation3], 1
    %12 = vsyncpa %s11, 0
    loop: start=0, step=1, limit=4
    $region2: #{tpu_custom_call.1} parent=1 // loop_pre_header
      _
    $region3: #{tpu_custom_call.1} parent=1 // loop_header
      %s14 = sphi 0, %s18
      %p15 = scmp.ge.s32.totalorder %s14, 4
      %s24 = sphi 0, %s26
      %s27 = sphi 0, %s24
      %s28 = sphi 0, %s27
      %s44 = sphi 0, %s28
      %s48 = sphi 0, %s48
      %s50 = sphi 0, %s48
      %s51 = sphi 0, %s50
      %s65 = sphi 0, %s51
      %s69 = sphi 0, %s69
      %s71 = sphi 0, %s69
      %s72 = sphi 0, %s71
      %s86 = sphi 0, %s72
      %s90 = sphi 0, %s90
      %s92 = sphi 0, %s90
      %s93 = sphi 0, %s92
      %s107 = sphi 0, %s93
      %s111 = sphi 0, %s111
      %s113 = sphi 0, %s111
      %s114 = sphi 0, %s113
      %s128 = sphi 0, %s114
      %s134 = sphi 0, %s136
      %s137 = sphi 0, %s134
      %s138 = sphi 0, %s137
      %s154 = sphi 0, %s138
    $region4: #{tpu_custom_call.1} parent=1 // loop_header_branch
      %17 = sbr.rel (%p15) target = $region8
    $region5: #{tpu_custom_call.1} parent=1 // loop_body
      %s19 = ssub.s32 %s14, 1
      %s20 = ssub.s32 %s14, 2
      %s21 = sadd.s32 %s14, 1
      %s22 = ssub.s32 %s14, %s21
      %p23 = scmp.eq.s32.totalorder %s22, 0
      %s25 = sadd.s32 %s24, 1
      %s26 = scalar_select %p23, %s24, %s25
      %p29 = pneg %p23
      %p30 = scmp.eq.s32.totalorder %s14, 1
      %p31 = por %p29, %p30
      %p32 = scmp.ne.s32.totalorder %s24, %s27
      %p33 = scmp.eq.s32.totalorder %s14, 0
      %p34 = por %p32, %p33
      %p35 = scmp.ne.s32.totalorder %s24, %s27
      %p36 = scmp.eq.s32.totalorder %s19, 1
      %p37 = por %p35, %p36
      %p38 = scmp.ne.s32.totalorder %s27, %s28
      %p39 = scmp.eq.s32.totalorder %s19, 0
      %p40 = por %p38, %p39
      %p41 = scmp.ne.s32.totalorder %s27, %s28
      %p42 = scmp.eq.s32.totalorder %s20, 1
      %p43 = por %p41, %p42
      %p45 = scmp.ne.s32.totalorder %s28, %s44
      %p46 = scmp.eq.s32.totalorder %s20, 0
      %p47 = por %p45, %p46
      %s49 = sadd.s32 %s48, 1
      %p52 = scmp.eq.s32.totalorder %s14, 1
      %p53 = scmp.ne.s32.totalorder %s48, %s50
      %p54 = scmp.eq.s32.totalorder %s14, 0
      %p55 = por %p53, %p54
      %p56 = scmp.ne.s32.totalorder %s48, %s50
      %p57 = scmp.eq.s32.totalorder %s19, 1
      %p58 = por %p56, %p57
      %p59 = scmp.ne.s32.totalorder %s50, %s51
      %p60 = scmp.eq.s32.totalorder %s19, 0
      %p61 = por %p59, %p60
      %p62 = scmp.ne.s32.totalorder %s50, %s51
      %p63 = scmp.eq.s32.totalorder %s20, 1
      %p64 = por %p62, %p63
      %p66 = scmp.ne.s32.totalorder %s51, %s65
      %p67 = scmp.eq.s32.totalorder %s20, 0
      %p68 = por %p66, %p67
      %s70 = sadd.s32 %s69, 1
      %p73 = scmp.eq.s32.totalorder %s14, 1
      %p74 = scmp.ne.s32.totalorder %s69, %s71
      %p75 = scmp.eq.s32.totalorder %s14, 0
      %p76 = por %p74, %p75
      %p77 = scmp.ne.s32.totalorder %s69, %s71
      %p78 = scmp.eq.s32.totalorder %s19, 1
      %p79 = por %p77, %p78
      %p80 = scmp.ne.s32.totalorder %s71, %s72
      %p81 = scmp.eq.s32.totalorder %s19, 0
      %p82 = por %p80, %p81
      %p83 = scmp.ne.s32.totalorder %s71, %s72
      %p84 = scmp.eq.s32.totalorder %s20, 1
      %p85 = por %p83, %p84
      %p87 = scmp.ne.s32.totalorder %s72, %s86
      %p88 = scmp.eq.s32.totalorder %s20, 0
      %p89 = por %p87, %p88
      %s91 = sadd.s32 %s90, 1
      %p94 = scmp.eq.s32.totalorder %s14, 1
      %p95 = scmp.ne.s32.totalorder %s90, %s92
      %p96 = scmp.eq.s32.totalorder %s14, 0
      %p97 = por %p95, %p96
      %p98 = scmp.ne.s32.totalorder %s90, %s92
      %p99 = scmp.eq.s32.totalorder %s19, 1
      %p100 = por %p98, %p99
      %p101 = scmp.ne.s32.totalorder %s92, %s93
      %p102 = scmp.eq.s32.totalorder %s19, 0
      %p103 = por %p101, %p102
      %p104 = scmp.ne.s32.totalorder %s92, %s93
      %p105 = scmp.eq.s32.totalorder %s20, 1
      %p106 = por %p104, %p105
      %p108 = scmp.ne.s32.totalorder %s93, %s107
      %p109 = scmp.eq.s32.totalorder %s20, 0
      %p110 = por %p108, %p109
      %s112 = sadd.s32 %s111, 1
      %p115 = scmp.eq.s32.totalorder %s14, 1
      %p116 = scmp.ne.s32.totalorder %s111, %s113
      %p117 = scmp.eq.s32.totalorder %s14, 0
      %p118 = por %p116, %p117
      %p119 = scmp.ne.s32.totalorder %s111, %s113
      %p120 = scmp.eq.s32.totalorder %s19, 1
      %p121 = por %p119, %p120
      %p122 = scmp.ne.s32.totalorder %s113, %s114
      %p123 = scmp.eq.s32.totalorder %s19, 0
      %p124 = por %p122, %p123
      %p125 = scmp.ne.s32.totalorder %s113, %s114
      %p126 = scmp.eq.s32.totalorder %s20, 1
      %p127 = por %p125, %p126
      %p129 = scmp.ne.s32.totalorder %s114, %s128
      %p130 = scmp.eq.s32.totalorder %s20, 0
      %p131 = por %p129, %p130
      %s132 = ssub.s32 %s14, %s21
      %p133 = scmp.eq.s32.totalorder %s132, 0
      %s135 = sadd.s32 %s134, 1
      %s136 = scalar_select %p133, %s134, %s135
      %p139 = pneg %p133
      %p140 = scmp.eq.s32.totalorder %s14, 1
      %p141 = por %p139, %p140
      %p142 = scmp.ne.s32.totalorder %s134, %s137
      %p143 = scmp.eq.s32.totalorder %s14, 0
      %p144 = por %p142, %p143
      %p145 = scmp.ne.s32.totalorder %s134, %s137
      %p146 = scmp.eq.s32.totalorder %s19, 1
      %p147 = por %p145, %p146
      %p148 = scmp.ne.s32.totalorder %s137, %s138
      %p149 = scmp.eq.s32.totalorder %s19, 0
      %p150 = por %p148, %p149
      %p151 = scmp.ne.s32.totalorder %s137, %s138
      %p152 = scmp.eq.s32.totalorder %s20, 1
      %p153 = por %p151, %p152
      %p155 = scmp.ne.s32.totalorder %s138, %s154
      %p156 = scmp.eq.s32.totalorder %s20, 0
      %p157 = por %p155, %p156
      %p158 = scmp.le.s32.totalorder 1, %s14
      %p159 = scmp.lt.s32.totalorder %s14, 3
      %p160 = pnand %p158, %p159
      %p161 = pneg %p160
      // Predicated region
      $region9: #{tpu_custom_call.1} parent=5 // pred_check
        _
      $region10: #{tpu_custom_call.1} parent=5 // pred_check_branch
        %163 = sbr.rel (%p160) target = $region12
      $region11: #{tpu_custom_call.1} parent=5 // pred_region
        %s164 = ssub.s32 %s14, 1
        // Predicated region
        $region13: #{tpu_custom_call.1} parent=11 // pred_check
          %p165 = pneg %p61
        $region14: #{tpu_custom_call.1} parent=11 // pred_check_branch
          %167 = sbr.rel (%p165) target = $region16
        $region15: #{tpu_custom_call.1} parent=11 // pred_region
          _
        $region16: #{tpu_custom_call.1} parent=11 // pred_fallthru
          _
        // Predicated region
        $region17: #{tpu_custom_call.1} parent=11 // pred_check
          %p168 = pneg %p82
        $region18: #{tpu_custom_call.1} parent=11 // pred_check_branch
          %170 = sbr.rel (%p168) target = $region20
        $region19: #{tpu_custom_call.1} parent=11 // pred_region
          _
        $region20: #{tpu_custom_call.1} parent=11 // pred_fallthru
          _
        // Predicated region
        $region21: #{tpu_custom_call.1} parent=11 // pred_check
          %p171 = pneg %p103
        $region22: #{tpu_custom_call.1} parent=11 // pred_check_branch
          %173 = sbr.rel (%p171) target = $region24
        $region23: #{tpu_custom_call.1} parent=11 // pred_region
          _
        $region24: #{tpu_custom_call.1} parent=11 // pred_fallthru
          _
        // Predicated region
        $region25: #{tpu_custom_call.1} parent=11 // pred_check
          %p174 = pneg %p124
        $region26: #{tpu_custom_call.1} parent=11 // pred_check_branch
          %176 = sbr.rel (%p174) target = $region28
        $region27: #{tpu_custom_call.1} parent=11 // pred_region
          _
        $region28: #{tpu_custom_call.1} parent=11 // pred_fallthru
          _
      $region12: #{tpu_custom_call.1} parent=5 // pred_fallthru
        _
      %p177 = scmp.lt.s32.totalorder %s14, 2
      // Predicated region
      $region29: #{tpu_custom_call.1} parent=5 // pred_check
        %p178 = pneg %p177
      $region30: #{tpu_custom_call.1} parent=5 // pred_check_branch
        %180 = sbr.rel (%p178) target = $region32
      $region31: #{tpu_custom_call.1} parent=5 // pred_region
        // Predicated region
        $region33: #{tpu_custom_call.1} parent=31 // pred_check
          %p181 = pneg %p34
        $region34: #{tpu_custom_call.1} parent=31 // pred_check_branch
          %183 = sbr.rel (%p181) target = $region36
        $region35: #{tpu_custom_call.1} parent=31 // pred_region
          %p184 = scmp.lt.s32.totalorder %s14, 1
          %s185 = scalar_select %p184, %s14, 1
          %s186 = smul.addr %s185, 8
          %s187 = scalar_lea.vmem %s0, %s186
        $region36: #{tpu_custom_call.1} parent=31 // pred_fallthru
          _
      $region32: #{tpu_custom_call.1} parent=5 // pred_fallthru
        _
      %p188 = scmp.le.s32.totalorder 1, %s14
      %p189 = scmp.lt.s32.totalorder %s14, 3
      %p190 = pnand %p188, %p189
      %p191 = pneg %p190
      // Predicated region
      $region37: #{tpu_custom_call.1} parent=5 // pred_check
        _
      $region38: #{tpu_custom_call.1} parent=5 // pred_check_branch
        %193 = sbr.rel (%p190) target = $region40
      $region39: #{tpu_custom_call.1} parent=5 // pred_region
        %s194 = ssub.s32 %s14, 1
        %p195 = scmp.lt.s32.totalorder %s19, 1
        %s196 = scalar_select %p195, %s19, 1
        %s197 = smul.addr %s196, 8
        %s198 = scalar_lea.vmem %s0, %s197
        %p199 = pneg %p40
        %p200 = pneg %p37
        %p201 = pneg %p61
        %p202 = pneg %p58
        %p203 = pneg %p82
        %p204 = pneg %p79
        %p205 = pneg %p103
        %p206 = pneg %p100
        %p207 = pneg %p124
        %p208 = pneg %p121
        %p209 = pneg %p150
        %p210 = pneg %p147
        %s211 = sand.u32 %s137, 1
        %s212 = scalar_lea.sflag [#allocation3], %s211
        %s213 = sand.u32 %s137, 1
        %s214 = smul.addr %s213, 8
        %s215 = scalar_lea.vmem [#allocation2], %s214
        %p216 = scmp.lt.s32.totalorder %s19, 1
        %s217 = scalar_select %p216, %s19, 1
        %s218 = smul.addr %s217, 8
        %s219 = scalar_lea.vmem %s0, %s218
        %v220 = vld [vmem:[%s219] sm:$0xff]
        %v221 = vld [vmem:[%s1] sm:$0xff]
        %v222 = vld [vmem:[%s1 + $0x8] sm:$0xff]
        %v223 = vld [vmem:[%s1 + $0x10] sm:$0xff]
        %v224 = vld [vmem:[%s1 + $0x18] sm:$0xff]
        %v225 = vld [vmem:[%s1 + $0x20] sm:$0xff]
        %v226 = vld [vmem:[%s1 + $0x28] sm:$0xff]
        %v227 = vld [vmem:[%s1 + $0x30] sm:$0xff]
        %v228 = vld [vmem:[%s1 + $0x38] sm:$0xff]
        %v229 = vld [vmem:[%s1 + $0x40] sm:$0xff]
        %v230 = vld [vmem:[%s1 + $0x48] sm:$0xff]
        %v231 = vld [vmem:[%s1 + $0x50] sm:$0xff]
        %v232 = vld [vmem:[%s1 + $0x58] sm:$0xff]
        %v233 = vld [vmem:[%s1 + $0x60] sm:$0xff]
        %v234 = vld [vmem:[%s1 + $0x68] sm:$0xff]
        %v235 = vld [vmem:[%s1 + $0x70] sm:$0xff]
        %v236 = vld [vmem:[%s1 + $0x78] sm:$0xff]
        %v237 = vld [vmem:[%s2] sm:$0x1]
        %v239 = vperm.slane %v237, 0
        %v241 = vand.u32 %v236, 4294901760
        %242 = vmatpush.msra.mxu0 %v241
        %v243 = vand.u32 %v235, 4294901760
        %244 = vmatpush.msra.mxu0 %v243
        %v245 = vand.u32 %v234, 4294901760
        %246 = vmatpush.msra.mxu0 %v245
        %v247 = vand.u32 %v233, 4294901760
        %248 = vmatpush.msra.mxu0 %v247
        %v249 = vand.u32 %v232, 4294901760
        %250 = vmatpush.msra.mxu0 %v249
        %v251 = vand.u32 %v231, 4294901760
        %252 = vmatpush.msra.mxu0 %v251
        %v253 = vand.u32 %v230, 4294901760
        %254 = vmatpush.msra.mxu0 %v253
        %v255 = vand.u32 %v229, 4294901760
        %256 = vmatpush.msra.mxu0 %v255
        %v257 = vand.u32 %v228, 4294901760
        %258 = vmatpush.msra.mxu0 %v257
        %v259 = vand.u32 %v227, 4294901760
        %260 = vmatpush.msra.mxu0 %v259
        %v261 = vand.u32 %v226, 4294901760
        %262 = vmatpush.msra.mxu0 %v261
        %v263 = vand.u32 %v225, 4294901760
        %264 = vmatpush.msra.mxu0 %v263
        %v265 = vand.u32 %v224, 4294901760
        %266 = vmatpush.msra.mxu0 %v265
        %v267 = vand.u32 %v223, 4294901760
        %268 = vmatpush.msra.mxu0 %v267
        %v269 = vand.u32 %v222, 4294901760
        %270 = vmatpush.msra.mxu0 %v269
        %v271 = vand.u32 %v221, 4294901760
        %272 = vmatpush.msra.mxu0 %v271
        %v273 = vand.u32 %v220, 4294901760
        %v274 = vsub.f32 %v220, %v273
        %v275 = vand.u32 %v274, 4294901760
        %v276 = vsub.f32 %v274, %v275
        %v277 = vand.u32 %v276, 4294901760
        %278 = vmatmul.f32.gmra.mxu0 %v277
        %v279 = vpop.f32.mrf.mxu0
        %v280 = vadd.f32 %v239, %v279
        %281 = vdwg.mxu0
        %v282 = vand.u32 %v236, 4294901760
        %v283 = vsub.f32 %v236, %v282
        %v284 = vand.u32 %v283, 4294901760
        %v285 = vsub.f32 %v283, %v284
        %v286 = vand.u32 %v285, 4294901760
        %287 = vmatpush.msra.mxu0 %v286
        %v288 = vand.u32 %v235, 4294901760
        %v289 = vsub.f32 %v235, %v288
        %v290 = vand.u32 %v289, 4294901760
        %v291 = vsub.f32 %v289, %v290
        %v292 = vand.u32 %v291, 4294901760
        %293 = vmatpush.msra.mxu0 %v292
        %v294 = vand.u32 %v234, 4294901760
        %v295 = vsub.f32 %v234, %v294
        %v296 = vand.u32 %v295, 4294901760
        %v297 = vsub.f32 %v295, %v296
        %v298 = vand.u32 %v297, 4294901760
        %299 = vmatpush.msra.mxu0 %v298
        %v300 = vand.u32 %v233, 4294901760
        %v301 = vsub.f32 %v233, %v300
        %v302 = vand.u32 %v301, 4294901760
        %v303 = vsub.f32 %v301, %v302
        %v304 = vand.u32 %v303, 4294901760
        %305 = vmatpush.msra.mxu0 %v304
        %v306 = vand.u32 %v232, 4294901760
        %v307 = vsub.f32 %v232, %v306
        %v308 = vand.u32 %v307, 4294901760
        %v309 = vsub.f32 %v307, %v308
        %v310 = vand.u32 %v309, 4294901760
        %311 = vmatpush.msra.mxu0 %v310
        %v312 = vand.u32 %v231, 4294901760
        %v313 = vsub.f32 %v231, %v312
        %v314 = vand.u32 %v313, 4294901760
        %v315 = vsub.f32 %v313, %v314
        %v316 = vand.u32 %v315, 4294901760
        %317 = vmatpush.msra.mxu0 %v316
        %v318 = vand.u32 %v230, 4294901760
        %v319 = vsub.f32 %v230, %v318
        %v320 = vand.u32 %v319, 4294901760
        %v321 = vsub.f32 %v319, %v320
        %v322 = vand.u32 %v321, 4294901760
        %323 = vmatpush.msra.mxu0 %v322
        %v324 = vand.u32 %v229, 4294901760
        %v325 = vsub.f32 %v229, %v324
        %v326 = vand.u32 %v325, 4294901760
        %v327 = vsub.f32 %v325, %v326
        %v328 = vand.u32 %v327, 4294901760
        %329 = vmatpush.msra.mxu0 %v328
        %v330 = vand.u32 %v228, 4294901760
        %v331 = vsub.f32 %v228, %v330
        %v332 = vand.u32 %v331, 4294901760
        %v333 = vsub.f32 %v331, %v332
        %v334 = vand.u32 %v333, 4294901760
        %335 = vmatpush.msra.mxu0 %v334
        %v336 = vand.u32 %v227, 4294901760
        %v337 = vsub.f32 %v227, %v336
        %v338 = vand.u32 %v337, 4294901760
        %v339 = vsub.f32 %v337, %v338
        %v340 = vand.u32 %v339, 4294901760
        %341 = vmatpush.msra.mxu0 %v340
        %v342 = vand.u32 %v226, 4294901760
        %v343 = vsub.f32 %v226, %v342
        %v344 = vand.u32 %v343, 4294901760
        %v345 = vsub.f32 %v343, %v344
        %v346 = vand.u32 %v345, 4294901760
        %347 = vmatpush.msra.mxu0 %v346
        %v348 = vand.u32 %v225, 4294901760
        %v349 = vsub.f32 %v225, %v348
        %v350 = vand.u32 %v349, 4294901760
        %v351 = vsub.f32 %v349, %v350
        %v352 = vand.u32 %v351, 4294901760
        %353 = vmatpush.msra.mxu0 %v352
        %v354 = vand.u32 %v224, 4294901760
        %v355 = vsub.f32 %v224, %v354
        %v356 = vand.u32 %v355, 4294901760
        %v357 = vsub.f32 %v355, %v356
        %v358 = vand.u32 %v357, 4294901760
        %359 = vmatpush.msra.mxu0 %v358
        %v360 = vand.u32 %v223, 4294901760
        %v361 = vsub.f32 %v223, %v360
        %v362 = vand.u32 %v361, 4294901760
        %v363 = vsub.f32 %v361, %v362
        %v364 = vand.u32 %v363, 4294901760
        %365 = vmatpush.msra.mxu0 %v364
        %v366 = vand.u32 %v222, 4294901760
        %v367 = vsub.f32 %v222, %v366
        %v368 = vand.u32 %v367, 4294901760
        %v369 = vsub.f32 %v367, %v368
        %v370 = vand.u32 %v369, 4294901760
        %371 = vmatpush.msra.mxu0 %v370
        %v372 = vand.u32 %v221, 4294901760
        %v373 = vsub.f32 %v221, %v372
        %v374 = vand.u32 %v373, 4294901760
        %v375 = vsub.f32 %v373, %v374
        %v376 = vand.u32 %v375, 4294901760
        %377 = vmatpush.msra.mxu0 %v376
        %v378 = vand.u32 %v220, 4294901760
        %379 = vmatmul.f32.gmra.mxu0 %v378
        %v380 = vpop.f32.mrf.mxu0
        %v381 = vadd.f32 %v280, %v380
        %382 = vdwg.mxu0
        %v383 = vand.u32 %v236, 4294901760
        %v384 = vsub.f32 %v236, %v383
        %385 = vmatpush.msra.mxu0 %v384
        %v386 = vand.u32 %v235, 4294901760
        %v387 = vsub.f32 %v235, %v386
        %388 = vmatpush.msra.mxu0 %v387
        %v389 = vand.u32 %v234, 4294901760
        %v390 = vsub.f32 %v234, %v389
        %391 = vmatpush.msra.mxu0 %v390
        %v392 = vand.u32 %v233, 4294901760
        %v393 = vsub.f32 %v233, %v392
        %394 = vmatpush.msra.mxu0 %v393
        %v395 = vand.u32 %v232, 4294901760
        %v396 = vsub.f32 %v232, %v395
        %397 = vmatpush.msra.mxu0 %v396
        %v398 = vand.u32 %v231, 4294901760
        %v399 = vsub.f32 %v231, %v398
        %400 = vmatpush.msra.mxu0 %v399
        %v401 = vand.u32 %v230, 4294901760
        %v402 = vsub.f32 %v230, %v401
        %403 = vmatpush.msra.mxu0 %v402
        %v404 = vand.u32 %v229, 4294901760
        %v405 = vsub.f32 %v229, %v404
        %406 = vmatpush.msra.mxu0 %v405
        %v407 = vand.u32 %v228, 4294901760
        %v408 = vsub.f32 %v228, %v407
        %409 = vmatpush.msra.mxu0 %v408
        %v410 = vand.u32 %v227, 4294901760
        %v411 = vsub.f32 %v227, %v410
        %412 = vmatpush.msra.mxu0 %v411
        %v413 = vand.u32 %v226, 4294901760
        %v414 = vsub.f32 %v226, %v413
        %415 = vmatpush.msra.mxu0 %v414
        %v416 = vand.u32 %v225, 4294901760
        %v417 = vsub.f32 %v225, %v416
        %418 = vmatpush.msra.mxu0 %v417
        %v419 = vand.u32 %v224, 4294901760
        %v420 = vsub.f32 %v224, %v419
        %421 = vmatpush.msra.mxu0 %v420
        %v422 = vand.u32 %v223, 4294901760
        %v423 = vsub.f32 %v223, %v422
        %424 = vmatpush.msra.mxu0 %v423
        %v425 = vand.u32 %v222, 4294901760
        %v426 = vsub.f32 %v222, %v425
        %427 = vmatpush.msra.mxu0 %v426
        %v428 = vand.u32 %v221, 4294901760
        %v429 = vsub.f32 %v221, %v428
        %430 = vmatpush.msra.mxu0 %v429
        %v431 = vand.u32 %v220, 4294901760
        %v432 = vsub.f32 %v220, %v431
        %433 = vmatmul.f32.gmra.mxu0 %v432
        %v434 = vpop.f32.mrf.mxu0
        %v435 = vadd.f32 %v381, %v434
        %436 = vdwg.mxu0
        %v437 = vand.u32 %v236, 4294901760
        %438 = vmatpush.msra.mxu0 %v437
        %v439 = vand.u32 %v235, 4294901760
        %440 = vmatpush.msra.mxu0 %v439
        %v441 = vand.u32 %v234, 4294901760
        %442 = vmatpush.msra.mxu0 %v441
        %v443 = vand.u32 %v233, 4294901760
        %444 = vmatpush.msra.mxu0 %v443
        %v445 = vand.u32 %v232, 4294901760
        %446 = vmatpush.msra.mxu0 %v445
        %v447 = vand.u32 %v231, 4294901760
        %448 = vmatpush.msra.mxu0 %v447
        %v449 = vand.u32 %v230, 4294901760
        %450 = vmatpush.msra.mxu0 %v449
        %v451 = vand.u32 %v229, 4294901760
        %452 = vmatpush.msra.mxu0 %v451
        %v453 = vand.u32 %v228, 4294901760
        %454 = vmatpush.msra.mxu0 %v453
        %v455 = vand.u32 %v227, 4294901760
        %456 = vmatpush.msra.mxu0 %v455
        %v457 = vand.u32 %v226, 4294901760
        %458 = vmatpush.msra.mxu0 %v457
        %v459 = vand.u32 %v225, 4294901760
        %460 = vmatpush.msra.mxu0 %v459
        %v461 = vand.u32 %v224, 4294901760
        %462 = vmatpush.msra.mxu0 %v461
        %v463 = vand.u32 %v223, 4294901760
        %464 = vmatpush.msra.mxu0 %v463
        %v465 = vand.u32 %v222, 4294901760
        %466 = vmatpush.msra.mxu0 %v465
        %v467 = vand.u32 %v221, 4294901760
        %468 = vmatpush.msra.mxu0 %v467
        %v469 = vand.u32 %v220, 4294901760
        %v470 = vsub.f32 %v220, %v469
        %v471 = vand.u32 %v470, 4294901760
        %472 = vmatmul.f32.gmra.mxu0 %v471
        %v473 = vpop.f32.mrf.mxu0
        %v474 = vadd.f32 %v435, %v473
        %475 = vdwg.mxu0
        %v476 = vand.u32 %v236, 4294901760
        %v477 = vsub.f32 %v236, %v476
        %v478 = vand.u32 %v477, 4294901760
        %479 = vmatpush.msra.mxu0 %v478
        %v480 = vand.u32 %v235, 4294901760
        %v481 = vsub.f32 %v235, %v480
        %v482 = vand.u32 %v481, 4294901760
        %483 = vmatpush.msra.mxu0 %v482
        %v484 = vand.u32 %v234, 4294901760
        %v485 = vsub.f32 %v234, %v484
        %v486 = vand.u32 %v485, 4294901760
        %487 = vmatpush.msra.mxu0 %v486
        %v488 = vand.u32 %v233, 4294901760
        %v489 = vsub.f32 %v233, %v488
        %v490 = vand.u32 %v489, 4294901760
        %491 = vmatpush.msra.mxu0 %v490
        %v492 = vand.u32 %v232, 4294901760
        %v493 = vsub.f32 %v232, %v492
        %v494 = vand.u32 %v493, 4294901760
        %495 = vmatpush.msra.mxu0 %v494
        %v496 = vand.u32 %v231, 4294901760
        %v497 = vsub.f32 %v231, %v496
        %v498 = vand.u32 %v497, 4294901760
        %499 = vmatpush.msra.mxu0 %v498
        %v500 = vand.u32 %v230, 4294901760
        %v501 = vsub.f32 %v230, %v500
        %v502 = vand.u32 %v501, 4294901760
        %503 = vmatpush.msra.mxu0 %v502
        %v504 = vand.u32 %v229, 4294901760
        %v505 = vsub.f32 %v229, %v504
        %v506 = vand.u32 %v505, 4294901760
        %507 = vmatpush.msra.mxu0 %v506
        %v508 = vand.u32 %v228, 4294901760
        %v509 = vsub.f32 %v228, %v508
        %v510 = vand.u32 %v509, 4294901760
        %511 = vmatpush.msra.mxu0 %v510
        %v512 = vand.u32 %v227, 4294901760
        %v513 = vsub.f32 %v227, %v512
        %v514 = vand.u32 %v513, 4294901760
        %515 = vmatpush.msra.mxu0 %v514
        %v516 = vand.u32 %v226, 4294901760
        %v517 = vsub.f32 %v226, %v516
        %v518 = vand.u32 %v517, 4294901760
        %519 = vmatpush.msra.mxu0 %v518
        %v520 = vand.u32 %v225, 4294901760
        %v521 = vsub.f32 %v225, %v520
        %v522 = vand.u32 %v521, 4294901760
        %523 = vmatpush.msra.mxu0 %v522
        %v524 = vand.u32 %v224, 4294901760
        %v525 = vsub.f32 %v224, %v524
        %v526 = vand.u32 %v525, 4294901760
        %527 = vmatpush.msra.mxu0 %v526
        %v528 = vand.u32 %v223, 4294901760
        %v529 = vsub.f32 %v223, %v528
        %v530 = vand.u32 %v529, 4294901760
        %531 = vmatpush.msra.mxu0 %v530
        %v532 = vand.u32 %v222, 4294901760
        %v533 = vsub.f32 %v222, %v532
        %v534 = vand.u32 %v533, 4294901760
        %535 = vmatpush.msra.mxu0 %v534
        %v536 = vand.u32 %v221, 4294901760
        %v537 = vsub.f32 %v221, %v536
        %v538 = vand.u32 %v537, 4294901760
        %539 = vmatpush.msra.mxu0 %v538
        %v540 = vand.u32 %v220, 4294901760
        %541 = vmatmul.f32.gmra.mxu0 %v540
        %v542 = vpop.f32.mrf.mxu0
        %v543 = vadd.f32 %v474, %v542
        %544 = vdwg.mxu0
        %v545 = vand.u32 %v236, 4294901760
        %546 = vmatpush.msra.mxu0 %v545
        %v547 = vand.u32 %v235, 4294901760
        %548 = vmatpush.msra.mxu0 %v547
        %v549 = vand.u32 %v234, 4294901760
        %550 = vmatpush.msra.mxu0 %v549
        %v551 = vand.u32 %v233, 4294901760
        %552 = vmatpush.msra.mxu0 %v551
        %v553 = vand.u32 %v232, 4294901760
        %554 = vmatpush.msra.mxu0 %v553
        %v555 = vand.u32 %v231, 4294901760
        %556 = vmatpush.msra.mxu0 %v555
        %v557 = vand.u32 %v230, 4294901760
        %558 = vmatpush.msra.mxu0 %v557
        %v559 = vand.u32 %v229, 4294901760
        %560 = vmatpush.msra.mxu0 %v559
        %v561 = vand.u32 %v228, 4294901760
        %562 = vmatpush.msra.mxu0 %v561
        %v563 = vand.u32 %v227, 4294901760
        %564 = vmatpush.msra.mxu0 %v563
        %v565 = vand.u32 %v226, 4294901760
        %566 = vmatpush.msra.mxu0 %v565
        %v567 = vand.u32 %v225, 4294901760
        %568 = vmatpush.msra.mxu0 %v567
        %v569 = vand.u32 %v224, 4294901760
        %570 = vmatpush.msra.mxu0 %v569
        %v571 = vand.u32 %v223, 4294901760
        %572 = vmatpush.msra.mxu0 %v571
        %v573 = vand.u32 %v222, 4294901760
        %574 = vmatpush.msra.mxu0 %v573
        %v575 = vand.u32 %v221, 4294901760
        %576 = vmatpush.msra.mxu0 %v575
        %v577 = vand.u32 %v220, 4294901760
        %578 = vmatmul.f32.gmra.mxu0 %v577
        %v579 = vpop.f32.mrf.mxu0
        %v580 = vadd.f32 %v543, %v579
        %581 = vdwg.mxu0
        %v582 = vmul.f32 %v580, 0.5
        %v583 = vmul.f32 %v580, 0.70710677
        %v584 = vmul.f32 %v583, %v583
        %v585 = vmin.f32 16.0, %v584
        %v586 = vmul.f32 %v585, 2.1237322e-06
        %v587 = vadd.f32 %v586, 0.00028619796
        %v588 = vmul.f32 %v585, %v587
        %v589 = vadd.f32 %v588, 0.0036580483
        %v590 = vmul.f32 %v585, %v589
        %v591 = vadd.f32 %v590, 0.05243302
        %v592 = vmul.f32 %v585, %v591
        %v593 = vadd.f32 %v592, 0.18741608
        %v594 = vmul.f32 %v585, %v593
        %v595 = vadd.f32 %v594, 1.1283791
        %v596 = vmul.f32 %v583, %v595
        %v597 = vmul.f32 %v585, 3.8918573e-05
        %v598 = vadd.f32 %v597, 0.001143296
        %v599 = vmul.f32 %v585, %v598
        %v600 = vadd.f32 %v599, 0.014752088
        %v601 = vmul.f32 %v585, %v600
        %v602 = vadd.f32 %v601, 0.112945676
        %v603 = vmul.f32 %v585, %v602
        %v604 = vadd.f32 %v603, 0.4994258
        %v605 = vmul.f32 %v585, %v604
        %v606 = vadd.f32 %v605, 1.0
        %v607 = vrcp.pop %v606
        %v608 = vmul.f32 %v606, %v607
        %v609 = vsub.f32 1.0, %v608
        %v610 = vmul.f32 %v607, %v609
        %v611 = vadd.f32 %v607, %v610
        %vm612 = vweird.f32 %v606
        %vm613 = vweird.f32 %v607
        %vm614 = vmor %vm612, %vm613
        %v615 = vsel %vm614, %v607, %v611
        %v616 = vand.u32 2147483647, %v606
        %vm617 = vcmp.eq.f32.partialorder %v616, 8.507059e+37
        %v618 = vand.u32 %v606, 2147483648
        %v619 = vor.u32 1.1754944e-38, %v618
        %v620 = vsel %vm617, %v619, %v615
        %v621 = vmul.f32 %v596, %v620
        %v622 = vmin.f32 %v621, 1.0
        %v623 = vmax.f32 %v622, -1.0
        %v624 = vadd.f32 %v623, 1.0
        %v625 = vmul.f32 %v582, %v624
        %v626 = vld [vmem:[%s3] sm:$0xff]
        %v627 = vld [vmem:[%s3 + $0x8] sm:$0xff]
        %v628 = vld [vmem:[%s3 + $0x10] sm:$0xff]
        %v629 = vld [vmem:[%s3 + $0x18] sm:$0xff]
        %v630 = vld [vmem:[%s3 + $0x20] sm:$0xff]
        %v631 = vld [vmem:[%s3 + $0x28] sm:$0xff]
        %v632 = vld [vmem:[%s3 + $0x30] sm:$0xff]
        %v633 = vld [vmem:[%s3 + $0x38] sm:$0xff]
        %v634 = vld [vmem:[%s4] sm:$0x1]
        %v636 = vperm.slane %v634, 0
        %vm638 = vcmask 523264
        %v640 = vsel %vm638, %v625, 0
        %642 = vmatpush.msra.mxu0 0.0
        %643 = vmatpush.msra.mxu0 0.0
        %644 = vmatpush.msra.mxu0 0.0
        %645 = vmatpush.msra.mxu0 0.0
        %646 = vmatpush.msra.mxu0 0.0
        %647 = vmatpush.msra.mxu0 0.0
        %648 = vmatpush.msra.mxu0 0.0
        %649 = vmatpush.msra.mxu0 0.0
        %v650 = vand.u32 %v633, 4294901760
        %651 = vmatpush.msra.mxu0 %v650
        %v652 = vand.u32 %v632, 4294901760
        %653 = vmatpush.msra.mxu0 %v652
        %v654 = vand.u32 %v631, 4294901760
        %655 = vmatpush.msra.mxu0 %v654
        %v656 = vand.u32 %v630, 4294901760
        %657 = vmatpush.msra.mxu0 %v656
        %v658 = vand.u32 %v629, 4294901760
        %659 = vmatpush.msra.mxu0 %v658
        %v660 = vand.u32 %v628, 4294901760
        %661 = vmatpush.msra.mxu0 %v660
        %v662 = vand.u32 %v627, 4294901760
        %663 = vmatpush.msra.mxu0 %v662
        %v664 = vand.u32 %v626, 4294901760
        %665 = vmatpush.msra.mxu0 %v664
        %v666 = vand.u32 %v640, 4294901760
        %v667 = vsub.f32 %v640, %v666
        %v668 = vand.u32 %v667, 4294901760
        %v669 = vsub.f32 %v667, %v668
        %v670 = vand.u32 %v669, 4294901760
        %671 = vmatmul.f32.gmra.mxu0 %v670
        %v672 = vpop.f32.mrf.mxu0
        %v673 = vadd.f32 %v636, %v672
        %674 = vdwg.mxu0
        %675 = vmatpush.msra.mxu0 0.0
        %676 = vmatpush.msra.mxu0 0.0
        %677 = vmatpush.msra.mxu0 0.0
        %678 = vmatpush.msra.mxu0 0.0
        %679 = vmatpush.msra.mxu0 0.0
        %680 = vmatpush.msra.mxu0 0.0
        %681 = vmatpush.msra.mxu0 0.0
        %682 = vmatpush.msra.mxu0 0.0
        %v683 = vand.u32 %v633, 4294901760
        %v684 = vsub.f32 %v633, %v683
        %v685 = vand.u32 %v684, 4294901760
        %v686 = vsub.f32 %v684, %v685
        %v687 = vand.u32 %v686, 4294901760
        %688 = vmatpush.msra.mxu0 %v687
        %v689 = vand.u32 %v632, 4294901760
        %v690 = vsub.f32 %v632, %v689
        %v691 = vand.u32 %v690, 4294901760
        %v692 = vsub.f32 %v690, %v691
        %v693 = vand.u32 %v692, 4294901760
        %694 = vmatpush.msra.mxu0 %v693
        %v695 = vand.u32 %v631, 4294901760
        %v696 = vsub.f32 %v631, %v695
        %v697 = vand.u32 %v696, 4294901760
        %v698 = vsub.f32 %v696, %v697
        %v699 = vand.u32 %v698, 4294901760
        %700 = vmatpush.msra.mxu0 %v699
        %v701 = vand.u32 %v630, 4294901760
        %v702 = vsub.f32 %v630, %v701
        %v703 = vand.u32 %v702, 4294901760
        %v704 = vsub.f32 %v702, %v703
        %v705 = vand.u32 %v704, 4294901760
        %706 = vmatpush.msra.mxu0 %v705
        %v707 = vand.u32 %v629, 4294901760
        %v708 = vsub.f32 %v629, %v707
        %v709 = vand.u32 %v708, 4294901760
        %v710 = vsub.f32 %v708, %v709
        %v711 = vand.u32 %v710, 4294901760
        %712 = vmatpush.msra.mxu0 %v711
        %v713 = vand.u32 %v628, 4294901760
        %v714 = vsub.f32 %v628, %v713
        %v715 = vand.u32 %v714, 4294901760
        %v716 = vsub.f32 %v714, %v715
        %v717 = vand.u32 %v716, 4294901760
        %718 = vmatpush.msra.mxu0 %v717
        %v719 = vand.u32 %v627, 4294901760
        %v720 = vsub.f32 %v627, %v719
        %v721 = vand.u32 %v720, 4294901760
        %v722 = vsub.f32 %v720, %v721
        %v723 = vand.u32 %v722, 4294901760
        %724 = vmatpush.msra.mxu0 %v723
        %v725 = vand.u32 %v626, 4294901760
        %v726 = vsub.f32 %v626, %v725
        %v727 = vand.u32 %v726, 4294901760
        %v728 = vsub.f32 %v726, %v727
        %v729 = vand.u32 %v728, 4294901760
        %730 = vmatpush.msra.mxu0 %v729
        %v731 = vand.u32 %v640, 4294901760
        %732 = vmatmul.f32.gmra.mxu0 %v731
        %v733 = vpop.f32.mrf.mxu0
        %v734 = vadd.f32 %v673, %v733
        %735 = vdwg.mxu0
        %736 = vmatpush.msra.mxu0 0.0
        %737 = vmatpush.msra.mxu0 0.0
        %738 = vmatpush.msra.mxu0 0.0
        %739 = vmatpush.msra.mxu0 0.0
        %740 = vmatpush.msra.mxu0 0.0
        %741 = vmatpush.msra.mxu0 0.0
        %742 = vmatpush.msra.mxu0 0.0
        %743 = vmatpush.msra.mxu0 0.0
        %v744 = vand.u32 %v633, 4294901760
        %v745 = vsub.f32 %v633, %v744
        %746 = vmatpush.msra.mxu0 %v745
        %v747 = vand.u32 %v632, 4294901760
        %v748 = vsub.f32 %v632, %v747
        %749 = vmatpush.msra.mxu0 %v748
        %v750 = vand.u32 %v631, 4294901760
        %v751 = vsub.f32 %v631, %v750
        %752 = vmatpush.msra.mxu0 %v751
        %v753 = vand.u32 %v630, 4294901760
        %v754 = vsub.f32 %v630, %v753
        %755 = vmatpush.msra.mxu0 %v754
        %v756 = vand.u32 %v629, 4294901760
        %v757 = vsub.f32 %v629, %v756
        %758 = vmatpush.msra.mxu0 %v757
        %v759 = vand.u32 %v628, 4294901760
        %v760 = vsub.f32 %v628, %v759
        %761 = vmatpush.msra.mxu0 %v760
        %v762 = vand.u32 %v627, 4294901760
        %v763 = vsub.f32 %v627, %v762
        %764 = vmatpush.msra.mxu0 %v763
        %v765 = vand.u32 %v626, 4294901760
        %v766 = vsub.f32 %v626, %v765
        %767 = vmatpush.msra.mxu0 %v766
        %v768 = vand.u32 %v640, 4294901760
        %v769 = vsub.f32 %v640, %v768
        %770 = vmatmul.f32.gmra.mxu0 %v769
        %v771 = vpop.f32.mrf.mxu0
        %v772 = vadd.f32 %v734, %v771
        %773 = vdwg.mxu0
        %774 = vmatpush.msra.mxu0 0.0
        %775 = vmatpush.msra.mxu0 0.0
        %776 = vmatpush.msra.mxu0 0.0
        %777 = vmatpush.msra.mxu0 0.0
        %778 = vmatpush.msra.mxu0 0.0
        %779 = vmatpush.msra.mxu0 0.0
        %780 = vmatpush.msra.mxu0 0.0
        %781 = vmatpush.msra.mxu0 0.0
        %v782 = vand.u32 %v633, 4294901760
        %783 = vmatpush.msra.mxu0 %v782
        %v784 = vand.u32 %v632, 4294901760
        %785 = vmatpush.msra.mxu0 %v784
        %v786 = vand.u32 %v631, 4294901760
        %787 = vmatpush.msra.mxu0 %v786
        %v788 = vand.u32 %v630, 4294901760
        %789 = vmatpush.msra.mxu0 %v788
        %v790 = vand.u32 %v629, 4294901760
        %791 = vmatpush.msra.mxu0 %v790
        %v792 = vand.u32 %v628, 4294901760
        %793 = vmatpush.msra.mxu0 %v792
        %v794 = vand.u32 %v627, 4294901760
        %795 = vmatpush.msra.mxu0 %v794
        %v796 = vand.u32 %v626, 4294901760
        %797 = vmatpush.msra.mxu0 %v796
        %v798 = vand.u32 %v640, 4294901760
        %v799 = vsub.f32 %v640, %v798
        %v800 = vand.u32 %v799, 4294901760
        %801 = vmatmul.f32.gmra.mxu0 %v800
        %v802 = vpop.f32.mrf.mxu0
        %v803 = vadd.f32 %v772, %v802
        %804 = vdwg.mxu0
        %805 = vmatpush.msra.mxu0 0.0
        %806 = vmatpush.msra.mxu0 0.0
        %807 = vmatpush.msra.mxu0 0.0
        %808 = vmatpush.msra.mxu0 0.0
        %809 = vmatpush.msra.mxu0 0.0
        %810 = vmatpush.msra.mxu0 0.0
        %811 = vmatpush.msra.mxu0 0.0
        %812 = vmatpush.msra.mxu0 0.0
        %v813 = vand.u32 %v633, 4294901760
        %v814 = vsub.f32 %v633, %v813
        %v815 = vand.u32 %v814, 4294901760
        %816 = vmatpush.msra.mxu0 %v815
        %v817 = vand.u32 %v632, 4294901760
        %v818 = vsub.f32 %v632, %v817
        %v819 = vand.u32 %v818, 4294901760
        %820 = vmatpush.msra.mxu0 %v819
        %v821 = vand.u32 %v631, 4294901760
        %v822 = vsub.f32 %v631, %v821
        %v823 = vand.u32 %v822, 4294901760
        %824 = vmatpush.msra.mxu0 %v823
        %v825 = vand.u32 %v630, 4294901760
        %v826 = vsub.f32 %v630, %v825
        %v827 = vand.u32 %v826, 4294901760
        %828 = vmatpush.msra.mxu0 %v827
        %v829 = vand.u32 %v629, 4294901760
        %v830 = vsub.f32 %v629, %v829
        %v831 = vand.u32 %v830, 4294901760
        %832 = vmatpush.msra.mxu0 %v831
        %v833 = vand.u32 %v628, 4294901760
        %v834 = vsub.f32 %v628, %v833
        %v835 = vand.u32 %v834, 4294901760
        %836 = vmatpush.msra.mxu0 %v835
        %v837 = vand.u32 %v627, 4294901760
        %v838 = vsub.f32 %v627, %v837
        %v839 = vand.u32 %v838, 4294901760
        %840 = vmatpush.msra.mxu0 %v839
        %v841 = vand.u32 %v626, 4294901760
        %v842 = vsub.f32 %v626, %v841
        %v843 = vand.u32 %v842, 4294901760
        %844 = vmatpush.msra.mxu0 %v843
        %v845 = vand.u32 %v640, 4294901760
        %846 = vmatmul.f32.gmra.mxu0 %v845
        %v847 = vpop.f32.mrf.mxu0
        %v848 = vadd.f32 %v803, %v847
        %849 = vdwg.mxu0
        %850 = vmatpush.msra.mxu0 0.0
        %851 = vmatpush.msra.mxu0 0.0
        %852 = vmatpush.msra.mxu0 0.0
        %853 = vmatpush.msra.mxu0 0.0
        %854 = vmatpush.msra.mxu0 0.0
        %855 = vmatpush.msra.mxu0 0.0
        %856 = vmatpush.msra.mxu0 0.0
        %857 = vmatpush.msra.mxu0 0.0
        %v858 = vand.u32 %v633, 4294901760
        %859 = vmatpush.msra.mxu0 %v858
        %v860 = vand.u32 %v632, 4294901760
        %861 = vmatpush.msra.mxu0 %v860
        %v862 = vand.u32 %v631, 4294901760
        %863 = vmatpush.msra.mxu0 %v862
        %v864 = vand.u32 %v630, 4294901760
        %865 = vmatpush.msra.mxu0 %v864
        %v866 = vand.u32 %v629, 4294901760
        %867 = vmatpush.msra.mxu0 %v866
        %v868 = vand.u32 %v628, 4294901760
        %869 = vmatpush.msra.mxu0 %v868
        %v870 = vand.u32 %v627, 4294901760
        %871 = vmatpush.msra.mxu0 %v870
        %v872 = vand.u32 %v626, 4294901760
        %873 = vmatpush.msra.mxu0 %v872
        %v874 = vand.u32 %v640, 4294901760
        %875 = vmatmul.f32.gmra.mxu0 %v874
        %v876 = vpop.f32.mrf.mxu0
        %v877 = vadd.f32 %v848, %v876
        %878 = vdwg.mxu0
        %879 = vst [vmem:[%s215] sm:$0xff] %v877
        %s880 = sand.u32 %s137, 1
        %s881 = scalar_lea.sflag [#allocation3], %s880
        %s882 = sand.u32 %s137, 1
        %s883 = smul.addr %s882, 8
        %s884 = scalar_lea.vmem [#allocation2], %s883
        // Predicated region
        $region41: #{tpu_custom_call.1} parent=39 // pred_check
          %p885 = pneg %p147
        $region42: #{tpu_custom_call.1} parent=39 // pred_check_branch
          %887 = sbr.rel (%p885) target = $region44
        $region43: #{tpu_custom_call.1} parent=39 // pred_region
          %889 = vsyncadd %s881, 0
          %s890 = smul.addr %s19, 8
          %s891 = scalar_lea.hbm %s5, %s890
          %s893 = sshll.u32 %s884, 4
          %s894 = int_to_ptr.vmem [resolvable:$true] %s893
          %s895 = sshll.u32 %s891, 4
          %s896 = int_to_ptr.hbm [resolvable:$true] %s895
          %898 = dma.vmem_to_hbm [thread:$0]  %s894, 128, %s896, %s881
        $region44: #{tpu_custom_call.1} parent=39 // pred_fallthru
          _
      $region40: #{tpu_custom_call.1} parent=5 // pred_fallthru
        _
      %p899 = scmp.le.s32.totalorder 2, %s14
      // Predicated region
      $region45: #{tpu_custom_call.1} parent=5 // pred_check
        %p900 = pneg %p899
      $region46: #{tpu_custom_call.1} parent=5 // pred_check_branch
        %902 = sbr.rel (%p900) target = $region48
      $region47: #{tpu_custom_call.1} parent=5 // pred_region
        %s903 = ssub.s32 %s14, 2
        // Predicated region
        $region49: #{tpu_custom_call.1} parent=47 // pred_check
          %p904 = pneg %p153
        $region50: #{tpu_custom_call.1} parent=47 // pred_check_branch
          %906 = sbr.rel (%p904) target = $region52
        $region51: #{tpu_custom_call.1} parent=47 // pred_region
          %s907 = sand.u32 %s138, 1
          %s908 = scalar_lea.sflag [#allocation3], %s907
          %s909 = sand.u32 %s138, 1
          %s910 = smul.addr %s909, 8
          %s911 = scalar_lea.vmem [#allocation2], %s910
          %913 = dma.done %s908, 128
        $region52: #{tpu_custom_call.1} parent=47 // pred_fallthru
          _
      $region48: #{tpu_custom_call.1} parent=5 // pred_fallthru
        _
    $region6: #{tpu_custom_call.1} parent=1 // loop_footer
      %s18 = sadd.s32 1, %s14
    $region7: #{tpu_custom_call.1} parent=1 // loop_footer_branch
      %13 = sbr.rel target = $region3
    $region8: #{tpu_custom_call.1} parent=1 // loop_exit
      _
    %914 = vsyncpa [#allocation3], 1
    %s915 = scalar_lea.sflag [#allocation3], 1
    %916 = vsyncpa %s915, 1

</llo_original>
